<compile_context>
chip_gen: v5e
topology: v5e:2x2
jax: 0.10.0
libtpu: 0.0.40
codegen_flags: <defaults>
</compile_context>

<pallas_src>
import jax
import jax.numpy as jnp
from jax.experimental import pallas as pl
from jax.experimental.pallas import tpu as pltpu


def _cmul_kernel(xre_ref, xim_ref, wre_ref, wim_ref, ore_ref, oim_ref):
    """Complex channel contraction for one (B-tile, F-tile) block.

    xre/xim : (bB, Ci, bF)   real / imag parts of the truncated spectrum
    wre/wim : (Ci, Co, bF)   real / imag parts of the spectral weights
    ore/oim : (bB, Co, bF)   real / imag parts of the output spectrum
    """
    ci = wre_ref.shape[0]
    acc_re = jnp.zeros(ore_ref.shape, jnp.float32)
    acc_im = jnp.zeros(oim_ref.shape, jnp.float32)

    # Per-channel slices are read from the Refs inside the (fully unrolled)
    # loop: bounded live ranges, and the LLO scheduler overlaps the vld's with
    # the VALU work.  ci is small (module default ~4) so full unroll is cheap.
    for i in range(ci):
        ar = xre_ref[:, pl.ds(i, 1), :]      # (bB, 1, bF)
        ai = xim_ref[:, pl.ds(i, 1), :]
        wr = wre_ref[pl.ds(i, 1), :, :]      # (1, Co, bF)
        wi = wim_ref[pl.ds(i, 1), :, :]
        acc_re = acc_re + (ar * wr - ai * wi)
        acc_im = acc_im + (ar * wi + ai * wr)

    ore_ref[...] = acc_re
    oim_ref[...] = acc_im


def _largest_divisor(n, cap):
    cap = max(1, min(n, cap))
    for t in range(cap, 0, -1):
        if n % t == 0:
            return t
    return 1


def _pick_tiles(B, Ci, Co, Fp, budget_bytes=16 * 2**20):
    """Choose (bB, bF) so the double-buffered re+im working set fits budget."""
    bB = _largest_divisor(B, 8)

    def db_bytes(bb, bf):
        # f32, re+im planes, x + w + out tiles, double-buffered by the pipeline.
        return 2 * 4 * 2 * (bb * Ci + Ci * Co + bb * Co) * bf

    # Largest lane tile (multiple of 128 dividing Fp) under budget.
    bF = 128
    cand = Fp
    while cand >= 128:
        if Fp % cand == 0 and db_bytes(bB, cand) <= budget_bytes:
            bF = cand
            break
        cand -= 128

    # Grow the batch tile if VMEM still allows (fewer grid steps / less
    # per-step overhead); weights are already fetched only once per F tile.
    for cand_b in range(min(B, 64), bB, -1):
        if B % cand_b == 0 and db_bytes(cand_b, bF) <= budget_bytes:
            bB = cand_b
            break

    return bB, bF, db_bytes(bB, bF)


def spectral_cmul2d(x_re, x_im, w_re, w_im):
    """Pallas wrapper.  x_* (B,Ci,Fp), w_* (Ci,Co,Fp) -> (B,Co,Fp) x2 (f32).

    Fp must be a multiple of 128 (lane-dense last axis).
    """
    B, Ci, Fp = x_re.shape
    Co = w_re.shape[1]
    assert Fp % 128 == 0, "frequency axis must be padded to a multiple of 128"

    bB, bF, db_bytes = _pick_tiles(B, Ci, Co, Fp)
    # Scoped-VMEM limit: working set + headroom, capped well under v7x 64 MiB.
    vmem_limit = int(min(48 * 2**20, max(8 * 2**20, 2 * db_bytes)))

    # Grid: (F tiles, B tiles).  B is innermost and the weight index_maps are
    # constant in b, so weight tiles are NOT re-DMA'd across batch steps.
    grid = (Fp // bF, B // bB)

    grid_spec = pl.GridSpec(
        grid=grid,
        in_specs=[
            pl.BlockSpec((bB, Ci, bF), lambda f, b: (b, 0, f)),
            pl.BlockSpec((bB, Ci, bF), lambda f, b: (b, 0, f)),
            pl.BlockSpec((Ci, Co, bF), lambda f, b: (0, 0, f)),
            pl.BlockSpec((Ci, Co, bF), lambda f, b: (0, 0, f)),
        ],
        out_specs=(
            pl.BlockSpec((bB, Co, bF), lambda f, b: (b, 0, f)),
            pl.BlockSpec((bB, Co, bF), lambda f, b: (b, 0, f)),
        ),
    )

    o_re, o_im = pl.pallas_call(
        _cmul_kernel,
        grid_spec=grid_spec,
        out_shape=(
            jax.ShapeDtypeStruct((B, Co, Fp), jnp.float32),
            jax.ShapeDtypeStruct((B, Co, Fp), jnp.float32),
        ),
        compiler_params=pltpu.CompilerParams(
            dimension_semantics=("parallel", "parallel"),
            vmem_limit_bytes=vmem_limit,
        ),
    )(x_re, x_im, w_re, w_im)
    return o_re, o_im


def fft_conv2d(x, w):
    """Forward pass matching the PyTorch FFTConv2d module.

    x : (B, Ci, H, W) float32   (NCHW, same as PyTorch)
    w : (Ci, Co, 2*modes, modes, 2) float32  (last dim = real/imag)
    returns (B, Co, H, W) float32
    """
    B, Ci, H, W = x.shape
    Co = w.shape[1]
    m = w.shape[3]
    Wh = W // 2 + 1

    # --- FFT glue -------------------------------------------------------
    # TODO(synk): rfft2/irfft2 have no Pallas equivalent; kept in XLA.
    xf = jnp.fft.rfft2(x)                                   # (B,Ci,H,Wh) c64

    # fftshift(-2) followed by rows [cx-m, cx+m) of the shifted spectrum is
    # the same as unshifted rows [H-m, H) ++ [0, m)  (even H, cx = H//2 as in
    # the PyTorch module) -> avoid rolling the full spectrum.
    xs = jnp.concatenate([xf[..., H - m:, :m], xf[..., :m, :m]], axis=-2)

    F = 2 * m * m
    Fp = ((F + 127) // 128) * 128                           # lane-dense pad
    x_re = jnp.real(xs).reshape(B, Ci, F).astype(jnp.float32)
    x_im = jnp.imag(xs).reshape(B, Ci, F).astype(jnp.float32)
    w_re = w[..., 0].reshape(Ci, Co, F).astype(jnp.float32)
    w_im = w[..., 1].reshape(Ci, Co, F).astype(jnp.float32)
    pad = Fp - F
    if pad:
        x_re = jnp.pad(x_re, ((0, 0), (0, 0), (0, pad)))
        x_im = jnp.pad(x_im, ((0, 0), (0, 0), (0, pad)))
        w_re = jnp.pad(w_re, ((0, 0), (0, 0), (0, pad)))
        w_im = jnp.pad(w_im, ((0, 0), (0, 0), (0, pad)))

    # --- hot path: complex channel mixing in Pallas ----------------------
    o_re, o_im = spectral_cmul2d(x_re, x_im, w_re, w_im)
    out = (o_re[..., :F] + 1j * o_im[..., :F]).reshape(B, Co, 2 * m, m)

    # --- scatter directly into the UNshifted spectrum (fused ifftshift) --
    out_ft = jnp.zeros((B, Co, H, Wh), jnp.complex64)
    out_ft = out_ft.at[..., H - m:, :m].set(out[..., :m, :])
    out_ft = out_ft.at[..., :m, :m].set(out[..., m:, :])
    return jnp.fft.irfft2(out_ft, s=(H, W))


def ref_forward(x, w):
    """Pure-JAX reference identical to the PyTorch forward (for verification)."""
    B, Ci, H, W = x.shape
    Co = w.shape[1]
    m = w.shape[3]
    cx = H // 2
    wc = w[..., 0] + 1j * w[..., 1]
    xf = jnp.fft.fftshift(jnp.fft.rfft2(x), axes=-2)
    sl = xf[..., cx - m:cx + m, :m]
    out = jnp.einsum('bixy,ioxy->boxy', sl, wc)
    out_ft = jnp.zeros((B, Co, H, W // 2 + 1), jnp.complex64)
    out_ft = out_ft.at[..., cx - m:cx + m, :m].set(out)
    out_ft = jnp.fft.ifftshift(out_ft, axes=-2)
    return jnp.fft.irfft2(out_ft, s=(H, W))


if __name__ == "__main__":
    B, C_in, C_out, H, W, modes = 2, 4, 4, 16, 16, 4

    key = jax.random.PRNGKey(0)
    kx, kw = jax.random.split(key)

    x = jax.random.normal(kx, (B, C_in, H, W), dtype=jnp.float32)
    # matches torch.rand(...) / (in_channels*out_channels): uniform [0,1) scaled
    w = jax.random.uniform(kw, (C_in, C_out, 2 * modes, modes, 2),
                           dtype=jnp.float32) / (C_in * C_out)

    fwd = jax.jit(fft_conv2d)
    y = jax.block_until_ready(fwd(x, w))
    y_ref = jax.block_until_ready(ref_forward(x, w))

    assert y.shape == (B, C_out, H, W)
    assert jnp.allclose(y, y_ref, atol=1e-5, rtol=1e-4), "mismatch vs reference"

    print("KERNEL_OK")
</pallas_src>

<mosaic_0001>
module attributes {stable_mosaic.version = 11 : i64} {
  func.func @_cmul_kernel(%arg0: i32, %arg1: i32, %arg2: memref<2x4x128xf32, #tpu.memory_space<vmem>>, %arg3: memref<2x4x128xf32, #tpu.memory_space<vmem>>, %arg4: memref<4x4x128xf32, #tpu.memory_space<vmem>>, %arg5: memref<4x4x128xf32, #tpu.memory_space<vmem>>, %arg6: memref<2x4x128xf32, #tpu.memory_space<vmem>>, %arg7: memref<2x4x128xf32, #tpu.memory_space<vmem>>) attributes {dimension_semantics = [#tpu.dimension_semantics<parallel>, #tpu.dimension_semantics<parallel>], iteration_bounds = array<i64: 1, 1>, scalar_prefetch = 0 : i64, scratch_operands = 0 : i64, tpu.core_type = #tpu.core_type<tc>, window_params = [{transform_indices = @transform_0, window_bounds = array<i64: 2, 4, 128>}, {transform_indices = @transform_1, window_bounds = array<i64: 2, 4, 128>}, {transform_indices = @transform_2, window_bounds = array<i64: 4, 4, 128>}, {transform_indices = @transform_3, window_bounds = array<i64: 4, 4, 128>}, {transform_indices = @transform_4, window_bounds = array<i64: 2, 4, 128>}, {transform_indices = @transform_5, window_bounds = array<i64: 2, 4, 128>}]} {
    %cst = arith.constant 0.000000e+00 : f32
    %0 = vector.broadcast %cst : f32 to vector<2x4x128xf32>
    %cst_0 = arith.constant 0.000000e+00 : f32
    %1 = vector.broadcast %cst_0 : f32 to vector<2x4x128xf32>
    %c0 = arith.constant 0 : index
    %c0_1 = arith.constant 0 : index
    %c0_2 = arith.constant 0 : index
    %2 = vector.load %arg2[%c0, %c0_1, %c0_2] : memref<2x4x128xf32, #tpu.memory_space<vmem>>, vector<2x1x128xf32>
    %c0_3 = arith.constant 0 : index
    %c0_4 = arith.constant 0 : index
    %c0_5 = arith.constant 0 : index
    %3 = vector.load %arg3[%c0_3, %c0_4, %c0_5] : memref<2x4x128xf32, #tpu.memory_space<vmem>>, vector<2x1x128xf32>
    %c0_6 = arith.constant 0 : index
    %c0_7 = arith.constant 0 : index
    %c0_8 = arith.constant 0 : index
    %4 = vector.load %arg4[%c0_6, %c0_7, %c0_8] : memref<4x4x128xf32, #tpu.memory_space<vmem>>, vector<1x4x128xf32>
    %c0_9 = arith.constant 0 : index
    %c0_10 = arith.constant 0 : index
    %c0_11 = arith.constant 0 : index
    %5 = vector.load %arg5[%c0_9, %c0_10, %c0_11] : memref<4x4x128xf32, #tpu.memory_space<vmem>>, vector<1x4x128xf32>
    %6 = vector.broadcast %2 : vector<2x1x128xf32> to vector<2x4x128xf32>
    %7 = vector.broadcast %4 : vector<1x4x128xf32> to vector<2x4x128xf32>
    %8 = arith.mulf %6, %7 : vector<2x4x128xf32>
    %9 = vector.broadcast %3 : vector<2x1x128xf32> to vector<2x4x128xf32>
    %10 = vector.broadcast %5 : vector<1x4x128xf32> to vector<2x4x128xf32>
    %11 = arith.mulf %9, %10 : vector<2x4x128xf32>
    %12 = arith.subf %8, %11 : vector<2x4x128xf32>
    %13 = arith.addf %0, %12 : vector<2x4x128xf32>
    %14 = vector.broadcast %2 : vector<2x1x128xf32> to vector<2x4x128xf32>
    %15 = vector.broadcast %5 : vector<1x4x128xf32> to vector<2x4x128xf32>
    %16 = arith.mulf %14, %15 : vector<2x4x128xf32>
    %17 = vector.broadcast %3 : vector<2x1x128xf32> to vector<2x4x128xf32>
    %18 = vector.broadcast %4 : vector<1x4x128xf32> to vector<2x4x128xf32>
    %19 = arith.mulf %17, %18 : vector<2x4x128xf32>
    %20 = arith.addf %16, %19 : vector<2x4x128xf32>
    %21 = arith.addf %1, %20 : vector<2x4x128xf32>
    %c0_12 = arith.constant 0 : index
    %c1 = arith.constant 1 : index
    %c0_13 = arith.constant 0 : index
    %22 = vector.load %arg2[%c0_12, %c1, %c0_13] : memref<2x4x128xf32, #tpu.memory_space<vmem>>, vector<2x1x128xf32>
    %c0_14 = arith.constant 0 : index
    %c1_15 = arith.constant 1 : index
    %c0_16 = arith.constant 0 : index
    %23 = vector.load %arg3[%c0_14, %c1_15, %c0_16] : memref<2x4x128xf32, #tpu.memory_space<vmem>>, vector<2x1x128xf32>
    %c1_17 = arith.constant 1 : index
    %c0_18 = arith.constant 0 : index
    %c0_19 = arith.constant 0 : index
    %24 = vector.load %arg4[%c1_17, %c0_18, %c0_19] : memref<4x4x128xf32, #tpu.memory_space<vmem>>, vector<1x4x128xf32>
    %c1_20 = arith.constant 1 : index
    %c0_21 = arith.constant 0 : index
    %c0_22 = arith.constant 0 : index
    %25 = vector.load %arg5[%c1_20, %c0_21, %c0_22] : memref<4x4x128xf32, #tpu.memory_space<vmem>>, vector<1x4x128xf32>
    %26 = vector.broadcast %22 : vector<2x1x128xf32> to vector<2x4x128xf32>
    %27 = vector.broadcast %24 : vector<1x4x128xf32> to vector<2x4x128xf32>
    %28 = arith.mulf %26, %27 : vector<2x4x128xf32>
    %29 = vector.broadcast %23 : vector<2x1x128xf32> to vector<2x4x128xf32>
    %30 = vector.broadcast %25 : vector<1x4x128xf32> to vector<2x4x128xf32>
    %31 = arith.mulf %29, %30 : vector<2x4x128xf32>
    %32 = arith.subf %28, %31 : vector<2x4x128xf32>
    %33 = arith.addf %13, %32 : vector<2x4x128xf32>
    %34 = vector.broadcast %22 : vector<2x1x128xf32> to vector<2x4x128xf32>
    %35 = vector.broadcast %25 : vector<1x4x128xf32> to vector<2x4x128xf32>
    %36 = arith.mulf %34, %35 : vector<2x4x128xf32>
    %37 = vector.broadcast %23 : vector<2x1x128xf32> to vector<2x4x128xf32>
    %38 = vector.broadcast %24 : vector<1x4x128xf32> to vector<2x4x128xf32>
    %39 = arith.mulf %37, %38 : vector<2x4x128xf32>
    %40 = arith.addf %36, %39 : vector<2x4x128xf32>
    %41 = arith.addf %21, %40 : vector<2x4x128xf32>
    %c0_23 = arith.constant 0 : index
    %c2 = arith.constant 2 : index
    %c0_24 = arith.constant 0 : index
    %42 = vector.load %arg2[%c0_23, %c2, %c0_24] : memref<2x4x128xf32, #tpu.memory_space<vmem>>, vector<2x1x128xf32>
    %c0_25 = arith.constant 0 : index
    %c2_26 = arith.constant 2 : index
    %c0_27 = arith.constant 0 : index
    %43 = vector.load %arg3[%c0_25, %c2_26, %c0_27] : memref<2x4x128xf32, #tpu.memory_space<vmem>>, vector<2x1x128xf32>
    %c2_28 = arith.constant 2 : index
    %c0_29 = arith.constant 0 : index
    %c0_30 = arith.constant 0 : index
    %44 = vector.load %arg4[%c2_28, %c0_29, %c0_30] : memref<4x4x128xf32, #tpu.memory_space<vmem>>, vector<1x4x128xf32>
    %c2_31 = arith.constant 2 : index
    %c0_32 = arith.constant 0 : index
    %c0_33 = arith.constant 0 : index
    %45 = vector.load %arg5[%c2_31, %c0_32, %c0_33] : memref<4x4x128xf32, #tpu.memory_space<vmem>>, vector<1x4x128xf32>
    %46 = vector.broadcast %42 : vector<2x1x128xf32> to vector<2x4x128xf32>
    %47 = vector.broadcast %44 : vector<1x4x128xf32> to vector<2x4x128xf32>
    %48 = arith.mulf %46, %47 : vector<2x4x128xf32>
    %49 = vector.broadcast %43 : vector<2x1x128xf32> to vector<2x4x128xf32>
    %50 = vector.broadcast %45 : vector<1x4x128xf32> to vector<2x4x128xf32>
    %51 = arith.mulf %49, %50 : vector<2x4x128xf32>
    %52 = arith.subf %48, %51 : vector<2x4x128xf32>
    %53 = arith.addf %33, %52 : vector<2x4x128xf32>
    %54 = vector.broadcast %42 : vector<2x1x128xf32> to vector<2x4x128xf32>
    %55 = vector.broadcast %45 : vector<1x4x128xf32> to vector<2x4x128xf32>
    %56 = arith.mulf %54, %55 : vector<2x4x128xf32>
    %57 = vector.broadcast %43 : vector<2x1x128xf32> to vector<2x4x128xf32>
    %58 = vector.broadcast %44 : vector<1x4x128xf32> to vector<2x4x128xf32>
    %59 = arith.mulf %57, %58 : vector<2x4x128xf32>
    %60 = arith.addf %56, %59 : vector<2x4x128xf32>
    %61 = arith.addf %41, %60 : vector<2x4x128xf32>
    %c0_34 = arith.constant 0 : index
    %c3 = arith.constant 3 : index
    %c0_35 = arith.constant 0 : index
    %62 = vector.load %arg2[%c0_34, %c3, %c0_35] : memref<2x4x128xf32, #tpu.memory_space<vmem>>, vector<2x1x128xf32>
    %c0_36 = arith.constant 0 : index
    %c3_37 = arith.constant 3 : index
    %c0_38 = arith.constant 0 : index
    %63 = vector.load %arg3[%c0_36, %c3_37, %c0_38] : memref<2x4x128xf32, #tpu.memory_space<vmem>>, vector<2x1x128xf32>
    %c3_39 = arith.constant 3 : index
    %c0_40 = arith.constant 0 : index
    %c0_41 = arith.constant 0 : index
    %64 = vector.load %arg4[%c3_39, %c0_40, %c0_41] : memref<4x4x128xf32, #tpu.memory_space<vmem>>, vector<1x4x128xf32>
    %c3_42 = arith.constant 3 : index
    %c0_43 = arith.constant 0 : index
    %c0_44 = arith.constant 0 : index
    %65 = vector.load %arg5[%c3_42, %c0_43, %c0_44] : memref<4x4x128xf32, #tpu.memory_space<vmem>>, vector<1x4x128xf32>
    %66 = vector.broadcast %62 : vector<2x1x128xf32> to vector<2x4x128xf32>
    %67 = vector.broadcast %64 : vector<1x4x128xf32> to vector<2x4x128xf32>
    %68 = arith.mulf %66, %67 : vector<2x4x128xf32>
    %69 = vector.broadcast %63 : vector<2x1x128xf32> to vector<2x4x128xf32>
    %70 = vector.broadcast %65 : vector<1x4x128xf32> to vector<2x4x128xf32>
    %71 = arith.mulf %69, %70 : vector<2x4x128xf32>
    %72 = arith.subf %68, %71 : vector<2x4x128xf32>
    %73 = arith.addf %53, %72 : vector<2x4x128xf32>
    %74 = vector.broadcast %62 : vector<2x1x128xf32> to vector<2x4x128xf32>
    %75 = vector.broadcast %65 : vector<1x4x128xf32> to vector<2x4x128xf32>
    %76 = arith.mulf %74, %75 : vector<2x4x128xf32>
    %77 = vector.broadcast %63 : vector<2x1x128xf32> to vector<2x4x128xf32>
    %78 = vector.broadcast %64 : vector<1x4x128xf32> to vector<2x4x128xf32>
    %79 = arith.mulf %77, %78 : vector<2x4x128xf32>
    %80 = arith.addf %76, %79 : vector<2x4x128xf32>
    %81 = arith.addf %61, %80 : vector<2x4x128xf32>
    %c0_45 = arith.constant 0 : index
    %c0_46 = arith.constant 0 : index
    %c0_47 = arith.constant 0 : index
    %82 = vector.load %arg6[%c0_45, %c0_46, %c0_47] : memref<2x4x128xf32, #tpu.memory_space<vmem>>, vector<2x4x128xf32>
    tpu.vector_store %arg6[%c0_45, %c0_46, %c0_47], %73 {strides = array<i32>} : memref<2x4x128xf32, #tpu.memory_space<vmem>>, vector<2x4x128xf32>,
    %c0_48 = arith.constant 0 : index
    %c0_49 = arith.constant 0 : index
    %c0_50 = arith.constant 0 : index
    %83 = vector.load %arg7[%c0_48, %c0_49, %c0_50] : memref<2x4x128xf32, #tpu.memory_space<vmem>>, vector<2x4x128xf32>
    tpu.vector_store %arg7[%c0_48, %c0_49, %c0_50], %81 {strides = array<i32>} : memref<2x4x128xf32, #tpu.memory_space<vmem>>, vector<2x4x128xf32>,
    return
  }
  func.func @transform_0(%arg0: i32, %arg1: i32) -> (i32, i32, i32) {
    %c0_i32 = arith.constant 0 : i32
    %c0_i32_0 = arith.constant 0 : i32
    return %arg1, %c0_i32, %arg0 : i32, i32, i32
  }
  func.func @transform_1(%arg0: i32, %arg1: i32) -> (i32, i32, i32) {
    %c0_i32 = arith.constant 0 : i32
    %c0_i32_0 = arith.constant 0 : i32
    return %arg1, %c0_i32, %arg0 : i32, i32, i32
  }
  func.func @transform_2(%arg0: i32, %arg1: i32) -> (i32, i32, i32) {
    %c0_i32 = arith.constant 0 : i32
    %c0_i32_0 = arith.constant 0 : i32
    %c0_i32_1 = arith.constant 0 : i32
    return %c0_i32, %c0_i32_0, %arg0 : i32, i32, i32
  }
  func.func @transform_3(%arg0: i32, %arg1: i32) -> (i32, i32, i32) {
    %c0_i32 = arith.constant 0 : i32
    %c0_i32_0 = arith.constant 0 : i32
    %c0_i32_1 = arith.constant 0 : i32
    return %c0_i32, %c0_i32_0, %arg0 : i32, i32, i32
  }
  func.func @transform_4(%arg0: i32, %arg1: i32) -> (i32, i32, i32) {
    %c0_i32 = arith.constant 0 : i32
    %c0_i32_0 = arith.constant 0 : i32
    return %arg1, %c0_i32, %arg0 : i32, i32, i32
  }
  func.func @transform_5(%arg0: i32, %arg1: i32) -> (i32, i32, i32) {
    %c0_i32 = arith.constant 0 : i32
    %c0_i32_0 = arith.constant 0 : i32
    return %arg1, %c0_i32, %arg0 : i32, i32, i32
  }
}

</mosaic_0001>

<llo_original>
// kernel: squeeze.3
$region0: #{squeeze.3}
  %s0 = inlined_call_operand.vmem [shape: f32[4,4,8,4,1], index: 0, kind: input, shape index: {}]
  %s1 = inlined_call_operand.vmem [shape: f32[4,4,32], index: 1, kind: output, shape index: {}]
  $region1: #{squeeze.3} parent=0
    #allocation0 [shape = 'u8[16384]{0}', space=vmem, size = 0x4000, scoped, tag = 'scoped mem for output reshape']
    %v2 = vld [vmem:[%s0] ss:$8 sm:$0xf]
    %v3 = vld [vmem:[%s0] ss:$8 sm:$0xf0]
    %vm4 = vcmask 1047556
    %v5 = vsel %vm4, %v3, %v2
    %vm6 = vcmask 31744
    %7 = vst.msk [vmem:[#allocation0] sm:$0xf] %vm6, %v5
    %s8 = scalar_lea.vmem [#allocation0], 4
    %9 = vst.msk [vmem:[%s8] sm:$0xf0] %vm6, %v5
    %s10 = scalar_lea.vmem %s0, 64
    %v11 = vld [vmem:[%s10] ss:$8 sm:$0xf]
    %s12 = scalar_lea.vmem %s0, 64
    %v13 = vld [vmem:[%s12] ss:$8 sm:$0xf0]
    %vm14 = vcmask 1047556
    %v15 = vsel %vm14, %v13, %v11
    %vm16 = vcmask 31744
    %s17 = scalar_lea.vmem [#allocation0], 16
    %18 = vst.msk [vmem:[%s17] sm:$0xf] %vm16, %v15
    %s19 = scalar_lea.vmem [#allocation0], 20
    %20 = vst.msk [vmem:[%s19] sm:$0xf0] %vm16, %v15
    %s21 = scalar_lea.vmem %s0, 7
    %v22 = vld [vmem:[%s21] ss:$8 sm:$0xf]
    %s23 = scalar_lea.vmem %s0, 7
    %v24 = vld [vmem:[%s23] ss:$8 sm:$0xf0]
    %vm25 = vcmask 1047556
    %v26 = vsel %vm25, %v24, %v22
    %27 = vrot.lane.b32.xlu0 %v26, 28
    %v28 = vpop.permute.xlu0 %27
    %vm29 = vcmask 261344
    %30 = vst.msk [vmem:[#allocation0] sm:$0xf] %vm29, %v28
    %s31 = scalar_lea.vmem [#allocation0], 4
    %32 = vst.msk [vmem:[%s31] sm:$0xf0] %vm29, %v28
    %s33 = scalar_lea.vmem %s0, 71
    %v34 = vld [vmem:[%s33] ss:$8 sm:$0xf]
    %s35 = scalar_lea.vmem %s0, 71
    %v36 = vld [vmem:[%s35] ss:$8 sm:$0xf0]
    %vm37 = vcmask 1047556
    %v38 = vsel %vm37, %v36, %v34
    %39 = vrot.lane.b32.xlu0 %v38, 28
    %v40 = vpop.permute.xlu0 %39
    %vm41 = vcmask 261344
    %s42 = scalar_lea.vmem [#allocation0], 16
    %43 = vst.msk [vmem:[%s42] sm:$0xf] %vm41, %v40
    %s44 = scalar_lea.vmem [#allocation0], 20
    %45 = vst.msk [vmem:[%s44] sm:$0xf0] %vm41, %v40
    %s46 = scalar_lea.vmem %s0, 6
    %v47 = vld [vmem:[%s46] ss:$8 sm:$0xf]
    %s48 = scalar_lea.vmem %s0, 6
    %v49 = vld [vmem:[%s48] ss:$8 sm:$0xf0]
    %vm50 = vcmask 1047556
    %v51 = vsel %vm50, %v49, %v47
    %52 = vrot.lane.b32.xlu0 %v51, 24
    %v53 = vpop.permute.xlu0 %52
    %vm54 = vcmask 228544
    %55 = vst.msk [vmem:[#allocation0] sm:$0xf] %vm54, %v53
    %s56 = scalar_lea.vmem [#allocation0], 4
    %57 = vst.msk [vmem:[%s56] sm:$0xf0] %vm54, %v53
    %s58 = scalar_lea.vmem %s0, 70
    %v59 = vld [vmem:[%s58] ss:$8 sm:$0xf]
    %s60 = scalar_lea.vmem %s0, 70
    %v61 = vld [vmem:[%s60] ss:$8 sm:$0xf0]
    %vm62 = vcmask 1047556
    %v63 = vsel %vm62, %v61, %v59
    %64 = vrot.lane.b32.xlu0 %v63, 24
    %v65 = vpop.permute.xlu0 %64
    %vm66 = vcmask 228544
    %s67 = scalar_lea.vmem [#allocation0], 16
    %68 = vst.msk [vmem:[%s67] sm:$0xf] %vm66, %v65
    %s69 = scalar_lea.vmem [#allocation0], 20
    %70 = vst.msk [vmem:[%s69] sm:$0xf0] %vm66, %v65
    %s71 = scalar_lea.vmem %s0, 5
    %v72 = vld [vmem:[%s71] ss:$8 sm:$0xf]
    %s73 = scalar_lea.vmem %s0, 5
    %v74 = vld [vmem:[%s73] ss:$8 sm:$0xf0]
    %vm75 = vcmask 1047556
    %v76 = vsel %vm75, %v74, %v72
    %77 = vrot.lane.b32.xlu0 %v76, 20
    %v78 = vpop.permute.xlu0 %77
    %vm79 = vcmask 195744
    %80 = vst.msk [vmem:[#allocation0] sm:$0xf] %vm79, %v78
    %s81 = scalar_lea.vmem [#allocation0], 4
    %82 = vst.msk [vmem:[%s81] sm:$0xf0] %vm79, %v78
    %s83 = scalar_lea.vmem %s0, 69
    %v84 = vld [vmem:[%s83] ss:$8 sm:$0xf]
    %s85 = scalar_lea.vmem %s0, 69
    %v86 = vld [vmem:[%s85] ss:$8 sm:$0xf0]
    %vm87 = vcmask 1047556
    %v88 = vsel %vm87, %v86, %v84
    %89 = vrot.lane.b32.xlu0 %v88, 20
    %v90 = vpop.permute.xlu0 %89
    %vm91 = vcmask 195744
    %s92 = scalar_lea.vmem [#allocation0], 16
    %93 = vst.msk [vmem:[%s92] sm:$0xf] %vm91, %v90
    %s94 = scalar_lea.vmem [#allocation0], 20
    %95 = vst.msk [vmem:[%s94] sm:$0xf0] %vm91, %v90
    %s96 = scalar_lea.vmem %s0, 4
    %v97 = vld [vmem:[%s96] ss:$8 sm:$0xf]
    %s98 = scalar_lea.vmem %s0, 4
    %v99 = vld [vmem:[%s98] ss:$8 sm:$0xf0]
    %vm100 = vcmask 1047556
    %v101 = vsel %vm100, %v99, %v97
    %102 = vrot.lane.b32.xlu0 %v101, 16
    %v103 = vpop.permute.xlu0 %102
    %vm104 = vcmask 162944
    %105 = vst.msk [vmem:[#allocation0] sm:$0xf] %vm104, %v103
    %s106 = scalar_lea.vmem [#allocation0], 4
    %107 = vst.msk [vmem:[%s106] sm:$0xf0] %vm104, %v103
    %s108 = scalar_lea.vmem %s0, 68
    %v109 = vld [vmem:[%s108] ss:$8 sm:$0xf]
    %s110 = scalar_lea.vmem %s0, 68
    %v111 = vld [vmem:[%s110] ss:$8 sm:$0xf0]
    %vm112 = vcmask 1047556
    %v113 = vsel %vm112, %v111, %v109
    %114 = vrot.lane.b32.xlu0 %v113, 16
    %v115 = vpop.permute.xlu0 %114
    %vm116 = vcmask 162944
    %s117 = scalar_lea.vmem [#allocation0], 16
    %118 = vst.msk [vmem:[%s117] sm:$0xf] %vm116, %v115
    %s119 = scalar_lea.vmem [#allocation0], 20
    %120 = vst.msk [vmem:[%s119] sm:$0xf0] %vm116, %v115
    %s121 = scalar_lea.vmem %s0, 3
    %v122 = vld [vmem:[%s121] ss:$8 sm:$0xf]
    %s123 = scalar_lea.vmem %s0, 3
    %v124 = vld [vmem:[%s123] ss:$8 sm:$0xf0]
    %vm125 = vcmask 1047556
    %v126 = vsel %vm125, %v124, %v122
    %127 = vrot.lane.b32.xlu0 %v126, 12
    %v128 = vpop.permute.xlu0 %127
    %vm129 = vcmask 130144
    %130 = vst.msk [vmem:[#allocation0] sm:$0xf] %vm129, %v128
    %s131 = scalar_lea.vmem [#allocation0], 4
    %132 = vst.msk [vmem:[%s131] sm:$0xf0] %vm129, %v128
    %s133 = scalar_lea.vmem %s0, 67
    %v134 = vld [vmem:[%s133] ss:$8 sm:$0xf]
    %s135 = scalar_lea.vmem %s0, 67
    %v136 = vld [vmem:[%s135] ss:$8 sm:$0xf0]
    %vm137 = vcmask 1047556
    %v138 = vsel %vm137, %v136, %v134
    %139 = vrot.lane.b32.xlu0 %v138, 12
    %v140 = vpop.permute.xlu0 %139
    %vm141 = vcmask 130144
    %s142 = scalar_lea.vmem [#allocation0], 16
    %143 = vst.msk [vmem:[%s142] sm:$0xf] %vm141, %v140
    %s144 = scalar_lea.vmem [#allocation0], 20
    %145 = vst.msk [vmem:[%s144] sm:$0xf0] %vm141, %v140
    %s146 = scalar_lea.vmem %s0, 2
    %v147 = vld [vmem:[%s146] ss:$8 sm:$0xf]
    %s148 = scalar_lea.vmem %s0, 2
    %v149 = vld [vmem:[%s148] ss:$8 sm:$0xf0]
    %vm150 = vcmask 1047556
    %v151 = vsel %vm150, %v149, %v147
    %152 = vrot.lane.b32.xlu0 %v151, 8
    %v153 = vpop.permute.xlu0 %152
    %vm154 = vcmask 97344
    %155 = vst.msk [vmem:[#allocation0] sm:$0xf] %vm154, %v153
    %s156 = scalar_lea.vmem [#allocation0], 4
    %157 = vst.msk [vmem:[%s156] sm:$0xf0] %vm154, %v153
    %s158 = scalar_lea.vmem %s0, 66
    %v159 = vld [vmem:[%s158] ss:$8 sm:$0xf]
    %s160 = scalar_lea.vmem %s0, 66
    %v161 = vld [vmem:[%s160] ss:$8 sm:$0xf0]
    %vm162 = vcmask 1047556
    %v163 = vsel %vm162, %v161, %v159
    %164 = vrot.lane.b32.xlu0 %v163, 8
    %v165 = vpop.permute.xlu0 %164
    %vm166 = vcmask 97344
    %s167 = scalar_lea.vmem [#allocation0], 16
    %168 = vst.msk [vmem:[%s167] sm:$0xf] %vm166, %v165
    %s169 = scalar_lea.vmem [#allocation0], 20
    %170 = vst.msk [vmem:[%s169] sm:$0xf0] %vm166, %v165
    %s171 = scalar_lea.vmem %s0, 1
    %v172 = vld [vmem:[%s171] ss:$8 sm:$0xf]
    %s173 = scalar_lea.vmem %s0, 1
    %v174 = vld [vmem:[%s173] ss:$8 sm:$0xf0]
    %vm175 = vcmask 1047556
    %v176 = vsel %vm175, %v174, %v172
    %177 = vrot.lane.b32.xlu0 %v176, 4
    %v178 = vpop.permute.xlu0 %177
    %vm179 = vcmask 64544
    %180 = vst.msk [vmem:[#allocation0] sm:$0xf] %vm179, %v178
    %s181 = scalar_lea.vmem [#allocation0], 4
    %182 = vst.msk [vmem:[%s181] sm:$0xf0] %vm179, %v178
    %s183 = scalar_lea.vmem %s0, 65
    %v184 = vld [vmem:[%s183] ss:$8 sm:$0xf]
    %s185 = scalar_lea.vmem %s0, 65
    %v186 = vld [vmem:[%s185] ss:$8 sm:$0xf0]
    %vm187 = vcmask 1047556
    %v188 = vsel %vm187, %v186, %v184
    %189 = vrot.lane.b32.xlu0 %v188, 4
    %v190 = vpop.permute.xlu0 %189
    %vm191 = vcmask 64544
    %s192 = scalar_lea.vmem [#allocation0], 16
    %193 = vst.msk [vmem:[%s192] sm:$0xf] %vm191, %v190
    %s194 = scalar_lea.vmem [#allocation0], 20
    %195 = vst.msk [vmem:[%s194] sm:$0xf0] %vm191, %v190
    %s197 = ssub.s32 16, 1
    %v198 = vld [vmem:[#allocation0] sm:%s197]
    %s200 = ssub.s32 16, 1
    %201 = vst [vmem:[%s1] sm:%s200] %v198
    %s202 = scalar_lea.vmem [#allocation0], 8
    %v203 = vld [vmem:[%s202] sm:%s197]
    %s205 = ssub.s32 16, 1
    %s206 = scalar_lea.vmem %s1, 4
    %207 = vst [vmem:[%s206] sm:%s205] %v203
    %s208 = scalar_lea.vmem [#allocation0], 16
    %v209 = vld [vmem:[%s208] sm:%s197]
    %s211 = ssub.s32 16, 1
    %s212 = scalar_lea.vmem %s1, 8
    %213 = vst [vmem:[%s212] sm:%s211] %v209
    %s214 = scalar_lea.vmem [#allocation0], 24
    %v215 = vld [vmem:[%s214] sm:%s197]
    %s217 = ssub.s32 16, 1
    %s218 = scalar_lea.vmem %s1, 12
    %219 = vst [vmem:[%s218] sm:%s217] %v215

// kernel: fft_conv2d.1
$region0: #{fft_conv2d.1}
  #allocation0 [shape = 'u32[]', space=smem, size = 0x4, offset = 0x4, fixed_abs, tag = 'smem constant byte address 0x4 - core index']
  #allocation1 [shape = 'u32[72,128]{1,0:T(1,128)}', space=vmem, size = 0x9000, scoped, tag = 'internal scratch']
  %s0 = inlined_call_operand.vmem [shape: f32[2,4,128], index: 0, kind: input, shape index: {}]
  %s1 = inlined_call_operand.vmem [shape: f32[2,4,128], index: 1, kind: input, shape index: {}]
  %s2 = inlined_call_operand.vmem [shape: f32[4,4,128], index: 2, kind: input, shape index: {}]
  %s3 = inlined_call_operand.vmem [shape: f32[4,4,128], index: 3, kind: input, shape index: {}]
  %s4 = inlined_call_operand.vmem [shape: f32[2,4,128], index: 4, kind: output, shape index: {0}]
  %s5 = inlined_call_operand.vmem [shape: f32[2,4,128], index: 5, kind: output, shape index: {1}]
  %6 = xla_tuple %s4, %s5
  %s7 = sld [smem:[#allocation0]]
  $region34: #{fft_conv2d.1} parent=0
    _
  %s9 = ssub.s32 1, %s7
  %s10 = scalar_select 0, %s9, %s7
  // Predicated region
  $region2: #{fft_conv2d.1} parent=0 // pred_check
    _
  $region3: #{fft_conv2d.1} parent=0 // pred_check_branch
    %12 = sbr.rel (0) target = $region5
  $region4: #{fft_conv2d.1} parent=0 // pred_region
    _
  $region5: #{fft_conv2d.1} parent=0 // pred_fallthru
    _
  // Predicated region
  $region6: #{fft_conv2d.1} parent=0 // pred_check
    _
  $region7: #{fft_conv2d.1} parent=0 // pred_check_branch
    %14 = sbr.rel (0) target = $region9
  $region8: #{fft_conv2d.1} parent=0 // pred_region
    _
  $region9: #{fft_conv2d.1} parent=0 // pred_fallthru
    _
  // Predicated region
  $region10: #{fft_conv2d.1} parent=0 // pred_check
    _
  $region11: #{fft_conv2d.1} parent=0 // pred_check_branch
    %16 = sbr.rel (0) target = $region13
  $region12: #{fft_conv2d.1} parent=0 // pred_region
    _
  $region13: #{fft_conv2d.1} parent=0 // pred_fallthru
    _
  // Predicated region
  $region14: #{fft_conv2d.1} parent=0 // pred_check
    _
  $region15: #{fft_conv2d.1} parent=0 // pred_check_branch
    %18 = sbr.rel (0) target = $region17
  $region16: #{fft_conv2d.1} parent=0 // pred_region
    _
  $region17: #{fft_conv2d.1} parent=0 // pred_fallthru
    _
  %v19 = vld [vmem:[%s0] sm:$0x1]
  %v20 = vld [vmem:[%s0 + $0x4] sm:$0x1]
  %v21 = vld [vmem:[%s1] sm:$0x1]
  %v22 = vld [vmem:[%s1 + $0x4] sm:$0x1]
  %v23 = vld [vmem:[%s2] sm:$0xf]
  %v24 = vld [vmem:[%s3] sm:$0xf]
  %v25 = vperm.slane %v19, 0
  %v26 = vperm.slane %v20, 0
  %v27 = vmul.f32 %v25, %v23
  %v28 = vmul.f32 %v26, %v23
  %v29 = vperm.slane %v21, 0
  %v30 = vperm.slane %v22, 0
  %v31 = vmul.f32 %v29, %v24
  %v32 = vmul.f32 %v30, %v24
  %v33 = vsub.f32 %v27, %v31
  %v34 = vsub.f32 %v28, %v32
  %v35 = vadd.f32 %v33, 0.0
  %v36 = vadd.f32 %v34, 0.0
  %v37 = vmul.f32 %v25, %v24
  %v38 = vmul.f32 %v26, %v24
  %v39 = vmul.f32 %v29, %v23
  %v40 = vmul.f32 %v30, %v23
  %v41 = vadd.f32 %v37, %v39
  %v42 = vadd.f32 %v38, %v40
  %v43 = vadd.f32 %v41, 0.0
  %v44 = vadd.f32 %v42, 0.0
  %v45 = vld [vmem:[%s0 + $0x1] sm:$0x1]
  %v46 = vld [vmem:[%s0 + $0x5] sm:$0x1]
  %v47 = vld [vmem:[%s1 + $0x1] sm:$0x1]
  %v48 = vld [vmem:[%s1 + $0x5] sm:$0x1]
  %s49 = scalar_lea.vmem %s2, 4
  %v50 = vld [vmem:[%s49] sm:$0xf]
  %s51 = scalar_lea.vmem %s3, 4
  %v52 = vld [vmem:[%s51] sm:$0xf]
  %v53 = vperm.slane %v45, 0
  %v54 = vperm.slane %v46, 0
  %v55 = vmul.f32 %v53, %v50
  %v56 = vmul.f32 %v54, %v50
  %v57 = vperm.slane %v47, 0
  %v58 = vperm.slane %v48, 0
  %v59 = vmul.f32 %v57, %v52
  %v60 = vmul.f32 %v58, %v52
  %v61 = vsub.f32 %v55, %v59
  %v62 = vsub.f32 %v56, %v60
  %v63 = vadd.f32 %v35, %v61
  %v64 = vadd.f32 %v36, %v62
  %v65 = vmul.f32 %v53, %v52
  %v66 = vmul.f32 %v54, %v52
  %v67 = vmul.f32 %v57, %v50
  %v68 = vmul.f32 %v58, %v50
  %v69 = vadd.f32 %v65, %v67
  %v70 = vadd.f32 %v66, %v68
  %v71 = vadd.f32 %v43, %v69
  %v72 = vadd.f32 %v44, %v70
  %v73 = vld [vmem:[%s0 + $0x2] sm:$0x1]
  %v74 = vld [vmem:[%s0 + $0x6] sm:$0x1]
  %v75 = vld [vmem:[%s1 + $0x2] sm:$0x1]
  %v76 = vld [vmem:[%s1 + $0x6] sm:$0x1]
  %s77 = scalar_lea.vmem %s2, 8
  %v78 = vld [vmem:[%s77] sm:$0xf]
  %s79 = scalar_lea.vmem %s3, 8
  %v80 = vld [vmem:[%s79] sm:$0xf]
  %v81 = vperm.slane %v73, 0
  %v82 = vperm.slane %v74, 0
  %v83 = vmul.f32 %v81, %v78
  %v84 = vmul.f32 %v82, %v78
  %v85 = vperm.slane %v75, 0
  %v86 = vperm.slane %v76, 0
  %v87 = vmul.f32 %v85, %v80
  %v88 = vmul.f32 %v86, %v80
  %v89 = vsub.f32 %v83, %v87
  %v90 = vsub.f32 %v84, %v88
  %v91 = vadd.f32 %v63, %v89
  %v92 = vadd.f32 %v64, %v90
  %v93 = vmul.f32 %v81, %v80
  %v94 = vmul.f32 %v82, %v80
  %v95 = vmul.f32 %v85, %v78
  %v96 = vmul.f32 %v86, %v78
  %v97 = vadd.f32 %v93, %v95
  %v98 = vadd.f32 %v94, %v96
  %v99 = vadd.f32 %v71, %v97
  %v100 = vadd.f32 %v72, %v98
  %v101 = vld [vmem:[%s0 + $0x3] sm:$0x1]
  %v102 = vld [vmem:[%s0 + $0x7] sm:$0x1]
  %v103 = vld [vmem:[%s1 + $0x3] sm:$0x1]
  %v104 = vld [vmem:[%s1 + $0x7] sm:$0x1]
  %s105 = scalar_lea.vmem %s2, 12
  %v106 = vld [vmem:[%s105] sm:$0xf]
  %s107 = scalar_lea.vmem %s3, 12
  %v108 = vld [vmem:[%s107] sm:$0xf]
  %v109 = vperm.slane %v101, 0
  %v110 = vperm.slane %v102, 0
  %v111 = vmul.f32 %v109, %v106
  %v112 = vmul.f32 %v110, %v106
  %v113 = vperm.slane %v103, 0
  %v114 = vperm.slane %v104, 0
  %v115 = vmul.f32 %v113, %v108
  %v116 = vmul.f32 %v114, %v108
  %v117 = vsub.f32 %v111, %v115
  %v118 = vsub.f32 %v112, %v116
  %v119 = vadd.f32 %v91, %v117
  %v120 = vadd.f32 %v92, %v118
  %v121 = vmul.f32 %v109, %v108
  %v122 = vmul.f32 %v110, %v108
  %v123 = vmul.f32 %v113, %v106
  %v124 = vmul.f32 %v114, %v106
  %v125 = vadd.f32 %v121, %v123
  %v126 = vadd.f32 %v122, %v124
  %v127 = vadd.f32 %v99, %v125
  %v128 = vadd.f32 %v100, %v126
  %129 = vst [vmem:[%s4] sm:$0xf] %v119
  %130 = vst [vmem:[%s4 + $0x4] sm:$0xf] %v120
  %131 = vst [vmem:[%s5] sm:$0xf] %v127
  %132 = vst [vmem:[%s5 + $0x4] sm:$0xf] %v128
  // Predicated region
  $region18: #{fft_conv2d.1} parent=0 // pred_check
    _
  $region19: #{fft_conv2d.1} parent=0 // pred_check_branch
    %134 = sbr.rel (0) target = $region21
  $region20: #{fft_conv2d.1} parent=0 // pred_region
    _
  $region21: #{fft_conv2d.1} parent=0 // pred_fallthru
    _
  // Predicated region
  $region22: #{fft_conv2d.1} parent=0 // pred_check
    _
  $region23: #{fft_conv2d.1} parent=0 // pred_check_branch
    %136 = sbr.rel (0) target = $region25
  $region24: #{fft_conv2d.1} parent=0 // pred_region
    _
  $region25: #{fft_conv2d.1} parent=0 // pred_fallthru
    _
  // Predicated region
  $region26: #{fft_conv2d.1} parent=0 // pred_check
    _
  $region27: #{fft_conv2d.1} parent=0 // pred_check_branch
    %138 = sbr.rel (0) target = $region29
  $region28: #{fft_conv2d.1} parent=0 // pred_region
    _
  $region29: #{fft_conv2d.1} parent=0 // pred_fallthru
    _
  // Predicated region
  $region30: #{fft_conv2d.1} parent=0 // pred_check
    _
  $region31: #{fft_conv2d.1} parent=0 // pred_check_branch
    %140 = sbr.rel (0) target = $region33
  $region32: #{fft_conv2d.1} parent=0 // pred_region
    _
  $region33: #{fft_conv2d.1} parent=0 // pred_fallthru
    _

// kernel: reverse.1
$region0: #{reverse.1}
  %s0 = inlined_call_operand.vmem [shape: f32[2,4,16,7], index: 0, kind: input, shape index: {}]
  %s1 = inlined_call_operand.vmem [shape: f32[2,4,16,7], index: 1, kind: output, shape index: {}]
  $region1: #{reverse.1} parent=0
    #allocation0 [shape = 'u8[65536]{0}', space=vmem, size = 0x10000, scoped, tag = 'operand span for operand 0']
    #allocation1 [shape = 'u8[32768]{0}', space=vmem, size = 0x8000, scoped, tag = 'operand span for operand 1']
    %s2 = scalar_lea.vmem [#allocation0], 8
    // Predicated region
    $region2: #{reverse.1} parent=1 // pred_check
      _
    $region3: #{reverse.1} parent=1 // pred_check_branch
      %4 = sbr.rel (0) target = $region5
    $region4: #{reverse.1} parent=1 // pred_region
      // Predicated region
      $region6: #{reverse.1} parent=4 // pred_check
        _
      $region7: #{reverse.1} parent=4 // pred_check_branch
        %6 = sbr.rel (0) target = $region9
      $region8: #{reverse.1} parent=4 // pred_region
        // Predicated region
        $region21: #{reverse.1} parent=8 // pred_check
          _
        $region22: #{reverse.1} parent=8 // pred_check_branch
          %36 = sbr.rel (0) target = $region24
        $region23: #{reverse.1} parent=8 // pred_region
          loop: start=0, step=1, limit=1
          $region25: #{reverse.1} parent=23 // loop_pre_header
            _
          $region26: #{reverse.1} parent=23 // loop_header
            %s38 = sphi 0, %s42
            %p39 = scmp.ge.s32.totalorder %s38, 1
            %s43 = sphi %s0, %s0
            %s44 = sphi %s2, %s2
          $region27: #{reverse.1} parent=23 // loop_header_branch
            %41 = sbr.rel (%p39) target = $region31
          $region28: #{reverse.1} parent=23 // loop_body
            %v45 = vld [vmem:[%s43] sm:$0xff]
            %46 = vst [vmem:[%s44] sm:$0xff] %v45
            %v47 = vld [vmem:[%s43 + $0x8] sm:$0xff]
            %48 = vst [vmem:[%s44 + $0x10] sm:$0xff] %v47
            %v49 = vld [vmem:[%s43 + $0x10] sm:$0xff]
            %50 = vst [vmem:[%s44 + $0x20] sm:$0xff] %v49
            %v51 = vld [vmem:[%s43 + $0x18] sm:$0xff]
            %52 = vst [vmem:[%s44 + $0x30] sm:$0xff] %v51
            %v53 = vld [vmem:[%s43 + $0x20] sm:$0xff]
            %54 = vst [vmem:[%s44 + $0x40] sm:$0xff] %v53
            %v55 = vld [vmem:[%s43 + $0x28] sm:$0xff]
            %56 = vst [vmem:[%s44 + $0x50] sm:$0xff] %v55
            %v57 = vld [vmem:[%s43 + $0x30] sm:$0xff]
            %58 = vst [vmem:[%s44 + $0x60] sm:$0xff] %v57
            %v59 = vld [vmem:[%s43 + $0x38] sm:$0xff]
            %60 = vst [vmem:[%s44 + $0x70] sm:$0xff] %v59
          $region29: #{reverse.1} parent=23 // loop_footer
            %s42 = sadd.s32 1, %s38
          $region30: #{reverse.1} parent=23 // loop_footer_branch
            %37 = sbr.rel target = $region26
          $region31: #{reverse.1} parent=23 // loop_exit
            _
        $region24: #{reverse.1} parent=8 // pred_fallthru
          _
        // Predicated region
        $region32: #{reverse.1} parent=8 // pred_check
          _
        $region33: #{reverse.1} parent=8 // pred_check_branch
          %62 = sbr.rel target = $region35
        $region34: #{reverse.1} parent=8 // pred_region
          _
        $region35: #{reverse.1} parent=8 // pred_fallthru
          _
      $region9: #{reverse.1} parent=4 // pred_fallthru
        _
      // Predicated region
      $region10: #{reverse.1} parent=4 // pred_check
        _
      $region11: #{reverse.1} parent=4 // pred_check_branch
        %8 = sbr.rel target = $region13
      $region12: #{reverse.1} parent=4 // pred_region
        %s10 = ssub.s32 256, 1
        loop: start=0, step=1, limit=1
        $region14: #{reverse.1} parent=12 // loop_pre_header
          _
        $region15: #{reverse.1} parent=12 // loop_header
          %s12 = sphi 0, %s16
          %p13 = scmp.ge.s32.totalorder %s12, 1
          %s17 = sphi %s0, %s0
          %s18 = sphi %s2, %s2
        $region16: #{reverse.1} parent=12 // loop_header_branch
          %15 = sbr.rel (%p13) target = $region20
        $region17: #{reverse.1} parent=12 // loop_body
          %v19 = vld [vmem:[%s17] sm:%s10]
          %20 = vst [vmem:[%s18] sm:%s10] %v19
          %v21 = vld [vmem:[%s17 + $0x8] sm:%s10]
          %22 = vst [vmem:[%s18 + $0x10] sm:%s10] %v21
          %v23 = vld [vmem:[%s17 + $0x10] sm:%s10]
          %24 = vst [vmem:[%s18 + $0x20] sm:%s10] %v23
          %v25 = vld [vmem:[%s17 + $0x18] sm:%s10]
          %26 = vst [vmem:[%s18 + $0x30] sm:%s10] %v25
          %v27 = vld [vmem:[%s17 + $0x20] sm:%s10]
          %28 = vst [vmem:[%s18 + $0x40] sm:%s10] %v27
          %v29 = vld [vmem:[%s17 + $0x28] sm:%s10]
          %30 = vst [vmem:[%s18 + $0x50] sm:%s10] %v29
          %v31 = vld [vmem:[%s17 + $0x30] sm:%s10]
          %32 = vst [vmem:[%s18 + $0x60] sm:%s10] %v31
          %v33 = vld [vmem:[%s17 + $0x38] sm:%s10]
          %34 = vst [vmem:[%s18 + $0x70] sm:%s10] %v33
        $region18: #{reverse.1} parent=12 // loop_footer
          %s16 = sadd.s32 1, %s12
        $region19: #{reverse.1} parent=12 // loop_footer_branch
          %11 = sbr.rel target = $region15
        $region20: #{reverse.1} parent=12 // loop_exit
          _
      $region13: #{reverse.1} parent=4 // pred_fallthru
        _
    $region5: #{reverse.1} parent=1 // pred_fallthru
      _
    %63 = vnop
    %s64 = scalar_lea.vmem [#allocation0], 7
    %v65 = vld [vmem:[%s64] ss:$-1 sm:$0xff]
    %v66 = vrot.slane %v65, 1
    %67 = vst [vmem:[#allocation1] sm:$0xff] %v66
    %s68 = scalar_lea.vmem [#allocation0], 8
    %s69 = scalar_lea.vmem %s68, 7 [#allocation0]
    %v70 = vld [vmem:[%s69] ss:$-1 sm:$0xff]
    %v71 = vrot.slane %v70, 1
    %v72 = vlaneseq
    %v73 = vshrl.u32 %v72, 7
    %vm74 = vcmp.lt.s32.totalorder %v73, 7
    %75 = vst.msk [vmem:[#allocation1] sm:$0xff] %vm74, %v71
    %s76 = scalar_lea.vmem [#allocation1], 8
    %s77 = scalar_lea.vmem [#allocation0], 16
    %s78 = scalar_lea.vmem %s77, 7 [#allocation0]
    %v79 = vld [vmem:[%s78] ss:$-1 sm:$0xff]
    %v80 = vrot.slane %v79, 1
    %81 = vst [vmem:[%s76] sm:$0xff] %v80
    %s82 = scalar_lea.vmem %s77, 8 [#allocation0]
    %s83 = scalar_lea.vmem %s82, 7 [#allocation0]
    %v84 = vld [vmem:[%s83] ss:$-1 sm:$0xff]
    %v85 = vrot.slane %v84, 1
    %v86 = vlaneseq
    %v87 = vshrl.u32 %v86, 7
    %vm88 = vcmp.lt.s32.totalorder %v87, 7
    %89 = vst.msk [vmem:[%s76] sm:$0xff] %vm88, %v85
    %s90 = scalar_lea.vmem [#allocation1], 16
    %s91 = scalar_lea.vmem [#allocation0], 32
    %s92 = scalar_lea.vmem %s91, 7 [#allocation0]
    %v93 = vld [vmem:[%s92] ss:$-1 sm:$0xff]
    %v94 = vrot.slane %v93, 1
    %95 = vst [vmem:[%s90] sm:$0xff] %v94
    %s96 = scalar_lea.vmem %s91, 8 [#allocation0]
    %s97 = scalar_lea.vmem %s96, 7 [#allocation0]
    %v98 = vld [vmem:[%s97] ss:$-1 sm:$0xff]
    %v99 = vrot.slane %v98, 1
    %v100 = vlaneseq
    %v101 = vshrl.u32 %v100, 7
    %vm102 = vcmp.lt.s32.totalorder %v101, 7
    %103 = vst.msk [vmem:[%s90] sm:$0xff] %vm102, %v99
    %s104 = scalar_lea.vmem [#allocation1], 24
    %s105 = scalar_lea.vmem [#allocation0], 48
    %s106 = scalar_lea.vmem %s105, 7 [#allocation0]
    %v107 = vld [vmem:[%s106] ss:$-1 sm:$0xff]
    %v108 = vrot.slane %v107, 1
    %109 = vst [vmem:[%s104] sm:$0xff] %v108
    %s110 = scalar_lea.vmem %s105, 8 [#allocation0]
    %s111 = scalar_lea.vmem %s110, 7 [#allocation0]
    %v112 = vld [vmem:[%s111] ss:$-1 sm:$0xff]
    %v113 = vrot.slane %v112, 1
    %v114 = vlaneseq
    %v115 = vshrl.u32 %v114, 7
    %vm116 = vcmp.lt.s32.totalorder %v115, 7
    %117 = vst.msk [vmem:[%s104] sm:$0xff] %vm116, %v113
    %s118 = scalar_lea.vmem [#allocation1], 32
    %s119 = scalar_lea.vmem [#allocation0], 64
    %s120 = scalar_lea.vmem %s119, 7 [#allocation0]
    %v121 = vld [vmem:[%s120] ss:$-1 sm:$0xff]
    %v122 = vrot.slane %v121, 1
    %123 = vst [vmem:[%s118] sm:$0xff] %v122
    %s124 = scalar_lea.vmem %s119, 8 [#allocation0]
    %s125 = scalar_lea.vmem %s124, 7 [#allocation0]
    %v126 = vld [vmem:[%s125] ss:$-1 sm:$0xff]
    %v127 = vrot.slane %v126, 1
    %v128 = vlaneseq
    %v129 = vshrl.u32 %v128, 7
    %vm130 = vcmp.lt.s32.totalorder %v129, 7
    %131 = vst.msk [vmem:[%s118] sm:$0xff] %vm130, %v127
    %s132 = scalar_lea.vmem [#allocation1], 40
    %s133 = scalar_lea.vmem [#allocation0], 80
    %s134 = scalar_lea.vmem %s133, 7 [#allocation0]
    %v135 = vld [vmem:[%s134] ss:$-1 sm:$0xff]
    %v136 = vrot.slane %v135, 1
    %137 = vst [vmem:[%s132] sm:$0xff] %v136
    %s138 = scalar_lea.vmem %s133, 8 [#allocation0]
    %s139 = scalar_lea.vmem %s138, 7 [#allocation0]
    %v140 = vld [vmem:[%s139] ss:$-1 sm:$0xff]
    %v141 = vrot.slane %v140, 1
    %v142 = vlaneseq
    %v143 = vshrl.u32 %v142, 7
    %vm144 = vcmp.lt.s32.totalorder %v143, 7
    %145 = vst.msk [vmem:[%s132] sm:$0xff] %vm144, %v141
    %s146 = scalar_lea.vmem [#allocation1], 48
    %s147 = scalar_lea.vmem [#allocation0], 96
    %s148 = scalar_lea.vmem %s147, 7 [#allocation0]
    %v149 = vld [vmem:[%s148] ss:$-1 sm:$0xff]
    %v150 = vrot.slane %v149, 1
    %151 = vst [vmem:[%s146] sm:$0xff] %v150
    %s152 = scalar_lea.vmem %s147, 8 [#allocation0]
    %s153 = scalar_lea.vmem %s152, 7 [#allocation0]
    %v154 = vld [vmem:[%s153] ss:$-1 sm:$0xff]
    %v155 = vrot.slane %v154, 1
    %v156 = vlaneseq
    %v157 = vshrl.u32 %v156, 7
    %vm158 = vcmp.lt.s32.totalorder %v157, 7
    %159 = vst.msk [vmem:[%s146] sm:$0xff] %vm158, %v155
    %s160 = scalar_lea.vmem [#allocation1], 56
    %s161 = scalar_lea.vmem [#allocation0], 112
    %s162 = scalar_lea.vmem %s161, 7 [#allocation0]
    %v163 = vld [vmem:[%s162] ss:$-1 sm:$0xff]
    %v164 = vrot.slane %v163, 1
    %165 = vst [vmem:[%s160] sm:$0xff] %v164
    %s166 = scalar_lea.vmem %s161, 8 [#allocation0]
    %s167 = scalar_lea.vmem %s166, 7 [#allocation0]
    %v168 = vld [vmem:[%s167] ss:$-1 sm:$0xff]
    %v169 = vrot.slane %v168, 1
    %v170 = vlaneseq
    %v171 = vshrl.u32 %v170, 7
    %vm172 = vcmp.lt.s32.totalorder %v171, 7
    %173 = vst.msk [vmem:[%s160] sm:$0xff] %vm172, %v169
    // Predicated region
    $region36: #{reverse.1} parent=1 // pred_check
      _
    $region37: #{reverse.1} parent=1 // pred_check_branch
      %175 = sbr.rel (0) target = $region39
    $region38: #{reverse.1} parent=1 // pred_region
      // Predicated region
      $region40: #{reverse.1} parent=38 // pred_check
        _
      $region41: #{reverse.1} parent=38 // pred_check_branch
        %177 = sbr.rel (0) target = $region43
      $region42: #{reverse.1} parent=38 // pred_region
        // Predicated region
        $region55: #{reverse.1} parent=42 // pred_check
          _
        $region56: #{reverse.1} parent=42 // pred_check_branch
          %207 = sbr.rel (0) target = $region58
        $region57: #{reverse.1} parent=42 // pred_region
          loop: start=0, step=1, limit=1
          $region59: #{reverse.1} parent=57 // loop_pre_header
            _
          $region60: #{reverse.1} parent=57 // loop_header
            %s209 = sphi 0, %s213
            %p210 = scmp.ge.s32.totalorder %s209, 1
            %s214 = sphi [#allocation1], [#allocation1]
            %s215 = sphi %s1, %s1
          $region61: #{reverse.1} parent=57 // loop_header_branch
            %212 = sbr.rel (%p210) target = $region65
          $region62: #{reverse.1} parent=57 // loop_body
            %v216 = vld [vmem:[%s214] sm:$0xff]
            %217 = vst [vmem:[%s215] sm:$0xff] %v216
            %v218 = vld [vmem:[%s214 + $0x8] sm:$0xff]
            %219 = vst [vmem:[%s215 + $0x8] sm:$0xff] %v218
            %v220 = vld [vmem:[%s214 + $0x10] sm:$0xff]
            %221 = vst [vmem:[%s215 + $0x10] sm:$0xff] %v220
            %v222 = vld [vmem:[%s214 + $0x18] sm:$0xff]
            %223 = vst [vmem:[%s215 + $0x18] sm:$0xff] %v222
            %v224 = vld [vmem:[%s214 + $0x20] sm:$0xff]
            %225 = vst [vmem:[%s215 + $0x20] sm:$0xff] %v224
            %v226 = vld [vmem:[%s214 + $0x28] sm:$0xff]
            %227 = vst [vmem:[%s215 + $0x28] sm:$0xff] %v226
            %v228 = vld [vmem:[%s214 + $0x30] sm:$0xff]
            %229 = vst [vmem:[%s215 + $0x30] sm:$0xff] %v228
            %v230 = vld [vmem:[%s214 + $0x38] sm:$0xff]
            %231 = vst [vmem:[%s215 + $0x38] sm:$0xff] %v230
          $region63: #{reverse.1} parent=57 // loop_footer
            %s213 = sadd.s32 1, %s209
          $region64: #{reverse.1} parent=57 // loop_footer_branch
            %208 = sbr.rel target = $region60
          $region65: #{reverse.1} parent=57 // loop_exit
            _
        $region58: #{reverse.1} parent=42 // pred_fallthru
          _
        // Predicated region
        $region66: #{reverse.1} parent=42 // pred_check
          _
        $region67: #{reverse.1} parent=42 // pred_check_branch
          %233 = sbr.rel target = $region69
        $region68: #{reverse.1} parent=42 // pred_region
          _
        $region69: #{reverse.1} parent=42 // pred_fallthru
          _
      $region43: #{reverse.1} parent=38 // pred_fallthru
        _
      // Predicated region
      $region44: #{reverse.1} parent=38 // pred_check
        _
      $region45: #{reverse.1} parent=38 // pred_check_branch
        %179 = sbr.rel target = $region47
      $region46: #{reverse.1} parent=38 // pred_region
        %s181 = ssub.s32 256, 1
        loop: start=0, step=1, limit=1
        $region48: #{reverse.1} parent=46 // loop_pre_header
          _
        $region49: #{reverse.1} parent=46 // loop_header
          %s183 = sphi 0, %s187
          %p184 = scmp.ge.s32.totalorder %s183, 1
          %s188 = sphi [#allocation1], [#allocation1]
          %s189 = sphi %s1, %s1
        $region50: #{reverse.1} parent=46 // loop_header_branch
          %186 = sbr.rel (%p184) target = $region54
        $region51: #{reverse.1} parent=46 // loop_body
          %v190 = vld [vmem:[%s188] sm:%s181]
          %191 = vst [vmem:[%s189] sm:%s181] %v190
          %v192 = vld [vmem:[%s188 + $0x8] sm:%s181]
          %193 = vst [vmem:[%s189 + $0x8] sm:%s181] %v192
          %v194 = vld [vmem:[%s188 + $0x10] sm:%s181]
          %195 = vst [vmem:[%s189 + $0x10] sm:%s181] %v194
          %v196 = vld [vmem:[%s188 + $0x18] sm:%s181]
          %197 = vst [vmem:[%s189 + $0x18] sm:%s181] %v196
          %v198 = vld [vmem:[%s188 + $0x20] sm:%s181]
          %199 = vst [vmem:[%s189 + $0x20] sm:%s181] %v198
          %v200 = vld [vmem:[%s188 + $0x28] sm:%s181]
          %201 = vst [vmem:[%s189 + $0x28] sm:%s181] %v200
          %v202 = vld [vmem:[%s188 + $0x30] sm:%s181]
          %203 = vst [vmem:[%s189 + $0x30] sm:%s181] %v202
          %v204 = vld [vmem:[%s188 + $0x38] sm:%s181]
          %205 = vst [vmem:[%s189 + $0x38] sm:%s181] %v204
        $region52: #{reverse.1} parent=46 // loop_footer
          %s187 = sadd.s32 1, %s183
        $region53: #{reverse.1} parent=46 // loop_footer_branch
          %182 = sbr.rel target = $region49
        $region54: #{reverse.1} parent=46 // loop_exit
          _
      $region47: #{reverse.1} parent=38 // pred_fallthru
        _
    $region39: #{reverse.1} parent=1 // pred_fallthru
      _
    %234 = vnop

</llo_original>
